<compile_context>
chip_gen: v5e
topology: v5e:2x2
jax: 0.10.0
libtpu: 0.0.40
codegen_flags: <defaults>
</compile_context>

<pallas_src>
import math

import jax
import jax.numpy as jnp
from jax.experimental import pallas as pl
from jax.experimental.pallas import tpu as pltpu  # noqa: F401  (TPU backend assumed)

# ---- small, module-consistent shapes -------------------------------------
B, S, D = 2, 8, 32      # batch, sentence length, hidden dim
H = 4                   # number of attention heads
DH = D // H             # per-head dim
F = 64                  # feed-forward inner dim
EPS = 1e-5              # nn.LayerNorm default eps

# vector-slab row layout: one parameter vector per row, all starting at lane 0
_ROW_BQKV = 0           # width 3*D = 96
_ROW_BO = 1             # width D
_ROW_G1 = 2
_ROW_BE1 = 3
_ROW_B1 = 4             # width F = 64
_ROW_B2 = 5
_ROW_G2 = 6
_ROW_BE2 = 7
_VEC_ROWS = 8
_VEC_LANES = 128


def decoder_layer_kernel(x_ref, wqkv_ref, wo_ref, w1_ref, w2_ref, vec_ref, out_ref):
    xf = x_ref[...]                           # (B*S, D), already flattened by wrapper

    w_qkv = wqkv_ref[...]                     # (D, 3D); Q columns pre-scaled 1/sqrt(DH)
    w_o = wo_ref[...]                         # (D, D)
    w_1 = w1_ref[...]                         # (D, F)
    w_2 = w2_ref[...]                         # (F, D)
    vec = vec_ref[...]                        # (8, 128); every vector starts at lane 0

    b_qkv = vec[_ROW_BQKV:_ROW_BQKV + 1, 0:3 * D]
    b_o = vec[_ROW_BO:_ROW_BO + 1, 0:D]
    g1 = vec[_ROW_G1:_ROW_G1 + 1, 0:D]
    be1 = vec[_ROW_BE1:_ROW_BE1 + 1, 0:D]
    b_1 = vec[_ROW_B1:_ROW_B1 + 1, 0:F]
    b_2 = vec[_ROW_B2:_ROW_B2 + 1, 0:D]
    g2 = vec[_ROW_G2:_ROW_G2 + 1, 0:D]
    be2 = vec[_ROW_BE2:_ROW_BE2 + 1, 0:D]

    # ---- fused QKV projection: one MXU matmul over all B*S rows ------------
    qkv = jnp.dot(xf, w_qkv, preferred_element_type=jnp.float32) + b_qkv   # (16, 96)

    # ---- multi-head self-attention (static H=4 loop, batched over B) -------
    # Head outputs are accumulated through sublane-aligned row slices of Wo
    # instead of a lane concatenate of the heads.
    attn = jnp.zeros((B * S, D), jnp.float32)
    for h in range(H):
        qh = qkv[:, h * DH:(h + 1) * DH].reshape(B, S, DH)
        kh = qkv[:, D + h * DH:D + (h + 1) * DH].reshape(B, S, DH)
        vh = qkv[:, 2 * D + h * DH:2 * D + (h + 1) * DH].reshape(B, S, DH)
        s = jnp.einsum('bqd,bkd->bqk', qh, kh,
                       preferred_element_type=jnp.float32)                 # (B, S, S)
        s = s - jnp.max(s, axis=-1, keepdims=True)
        p = jnp.exp(s)
        p = p / jnp.sum(p, axis=-1, keepdims=True)                         # exact softmax
        oh = jnp.einsum('bqk,bkd->bqd', p, vh,
                        preferred_element_type=jnp.float32)                # (B, S, DH)
        attn = attn + jnp.dot(oh.reshape(B * S, DH),
                              w_o[h * DH:(h + 1) * DH, :],
                              preferred_element_type=jnp.float32)
    attn = attn + b_o
    # TODO(synk): no attention mask (matches unmasked self_attn(x, x, x) reference);
    # nn.Dropout in eval mode is the identity (training-mode dropout not implemented).

    # ---- residual + LayerNorm1 (two independent reduces) -------------------
    x1 = xf + attn
    mu1 = jnp.mean(x1, axis=-1, keepdims=True)
    var1 = jnp.mean(x1 * x1, axis=-1, keepdims=True) - mu1 * mu1
    x1n = (x1 - mu1) * jax.lax.rsqrt(var1 + EPS) * g1 + be1

    # ---- feed-forward: Linear(D->F) -> ReLU -> Linear(F->D) ----------------
    hdn = jnp.maximum(jnp.dot(x1n, w_1, preferred_element_type=jnp.float32) + b_1, 0.0)
    ff = jnp.dot(hdn, w_2, preferred_element_type=jnp.float32) + b_2

    # ---- residual + LayerNorm2 ----------------------------------------------
    x2 = x1n + ff
    mu2 = jnp.mean(x2, axis=-1, keepdims=True)
    var2 = jnp.mean(x2 * x2, axis=-1, keepdims=True) - mu2 * mu2
    out_ref[...] = (x2 - mu2) * jax.lax.rsqrt(var2 + EPS) * g2 + be2        # (16, 32)


def decoder_layer(x, params):
    """x: (B, S, D) float32.  params: (w_qkv (D,3D), w_o (D,D), w_1 (D,F), w_2 (F,D),
    vec (8,128))."""
    w_qkv, w_o, w_1, w_2, vec = params
    xf = x.reshape(B * S, D)                  # wrapper-side reshape is free in XLA
    out = pl.pallas_call(
        decoder_layer_kernel,
        out_shape=jax.ShapeDtypeStruct((B * S, D), jnp.float32),
        # No grid: single invocation, whole working set (<100 KB) resident in VMEM.
        # NOTE(v7x): a no-grid call uses one of the two TensorCores; if this layer is
        # ever scaled to realistic B*S, add a row-block grid with
        # compiler_params=pltpu.CompilerParams(dimension_semantics=("parallel",)) and
        # size tiles to the per-generation VMEM budget (64 MiB physical on v7x).
    )(xf, w_qkv, w_o, w_1, w_2, vec)
    return out.reshape(B, S, D)


def init_params(key):
    """Deterministic synthetic parameters.

    Returns (packed, raw): `packed` is what the kernel consumes; `raw` keeps the
    unpacked PyTorch-style tensors for the pure-JAX reference.
    """
    keys = jax.random.split(key, 6)
    sd = 0.05
    wq = sd * jax.random.normal(keys[0], (D, D), jnp.float32)
    wk = sd * jax.random.normal(keys[1], (D, D), jnp.float32)
    wv = sd * jax.random.normal(keys[2], (D, D), jnp.float32)
    wo = sd * jax.random.normal(keys[3], (D, D), jnp.float32)
    w1 = sd * jax.random.normal(keys[4], (D, F), jnp.float32)
    w2 = sd * jax.random.normal(keys[5], (F, D), jnp.float32)

    bq = jnp.zeros((D,), jnp.float32)
    bk = jnp.zeros((D,), jnp.float32)
    bv = jnp.zeros((D,), jnp.float32)
    bo = jnp.zeros((D,), jnp.float32)
    g1 = jnp.ones((D,), jnp.float32)
    be1 = jnp.zeros((D,), jnp.float32)
    b1 = jnp.zeros((F,), jnp.float32)
    b2 = jnp.zeros((D,), jnp.float32)
    g2 = jnp.ones((D,), jnp.float32)
    be2 = jnp.zeros((D,), jnp.float32)

    # fused QKV weight, with the 1/sqrt(DH) attention scale folded into Q columns
    scale = 1.0 / math.sqrt(DH)
    w_qkv = jnp.concatenate([wq * scale, wk, wv], axis=1)        # (D, 3D)

    # vector slab: (8, 128), one parameter vector per row, lane-0 aligned
    def _row(v):
        return jnp.pad(v, (0, _VEC_LANES - v.shape[0]))[None, :]

    vec = jnp.concatenate(
        [_row(jnp.concatenate([bq, bk, bv])),    # row 0: b_qkv (96)
         _row(bo), _row(g1), _row(be1),          # rows 1-3
         _row(b1), _row(b2), _row(g2), _row(be2)],  # rows 4-7
        axis=0).astype(jnp.float32)
    assert vec.shape == (_VEC_ROWS, _VEC_LANES)

    packed = (w_qkv, wo, w1, w2, vec)
    raw = dict(wq=wq, wk=wk, wv=wv, wo=wo, w1=w1, w2=w2,
               bq=bq, bk=bk, bv=bv, bo=bo, g1=g1, be1=be1,
               b1=b1, b2=b2, g2=g2, be2=be2)
    return packed, raw


def decoder_layer_ref(x, p):
    """Pure-JAX reference mirroring the PyTorch DecoderLayer (eval mode)."""
    hp = jax.lax.Precision.HIGHEST

    def ln(v, g, b):
        mu = v.mean(-1, keepdims=True)
        var = ((v - mu) ** 2).mean(-1, keepdims=True)
        return (v - mu) / jnp.sqrt(var + EPS) * g + b

    q = jnp.einsum('bsd,de->bse', x, p['wq'], precision=hp) + p['bq']
    k = jnp.einsum('bsd,de->bse', x, p['wk'], precision=hp) + p['bk']
    v = jnp.einsum('bsd,de->bse', x, p['wv'], precision=hp) + p['bv']
    qh = q.reshape(B, S, H, DH)
    kh = k.reshape(B, S, H, DH)
    vh = v.reshape(B, S, H, DH)
    scores = jnp.einsum('bqhd,bkhd->bhqk', qh, kh, precision=hp) / math.sqrt(DH)
    probs = jax.nn.softmax(scores, axis=-1)
    ctx = jnp.einsum('bhqk,bkhd->bqhd', probs, vh, precision=hp).reshape(B, S, D)
    attn = jnp.einsum('bsd,de->bse', ctx, p['wo'], precision=hp) + p['bo']

    x1 = ln(x + attn, p['g1'], p['be1'])
    h1 = jnp.maximum(jnp.einsum('bsd,df->bsf', x1, p['w1'], precision=hp) + p['b1'], 0.0)
    ff = jnp.einsum('bsf,fd->bsd', h1, p['w2'], precision=hp) + p['b2']
    return ln(x1 + ff, p['g2'], p['be2'])


if __name__ == "__main__":
    key = jax.random.PRNGKey(0)
    kx, kp = jax.random.split(key)
    x = jax.random.normal(kx, (B, S, D), jnp.float32)
    packed, raw = init_params(kp)

    out = decoder_layer(x, packed)
    jax.block_until_ready(out)
    assert out.shape == (B, S, D) and out.dtype == jnp.float32

    ref = decoder_layer_ref(x, raw)
    assert jnp.allclose(out, ref, rtol=2e-3, atol=2e-3), \
        f"max abs diff {jnp.max(jnp.abs(out - ref))}"
    print("KERNEL_OK")
</pallas_src>

<mosaic_0001>
module attributes {stable_mosaic.version = 11 : i64} {
  func.func @decoder_layer_kernel(%arg0: memref<16x32xf32, #tpu.memory_space<vmem>>, %arg1: memref<32x96xf32, #tpu.memory_space<vmem>>, %arg2: memref<32x32xf32, #tpu.memory_space<vmem>>, %arg3: memref<32x64xf32, #tpu.memory_space<vmem>>, %arg4: memref<64x32xf32, #tpu.memory_space<vmem>>, %arg5: memref<8x128xf32, #tpu.memory_space<vmem>>, %arg6: memref<16x32xf32, #tpu.memory_space<vmem>>) attributes {dimension_semantics = [], scalar_prefetch = 0 : i64, scratch_operands = 0 : i64, tpu.core_type = #tpu.core_type<tc>} {
    %c0 = arith.constant 0 : index
    %c0_0 = arith.constant 0 : index
    %0 = vector.load %arg0[%c0, %c0_0] : memref<16x32xf32, #tpu.memory_space<vmem>>, vector<16x32xf32>
    %c0_1 = arith.constant 0 : index
    %c0_2 = arith.constant 0 : index
    %1 = vector.load %arg1[%c0_1, %c0_2] : memref<32x96xf32, #tpu.memory_space<vmem>>, vector<32x96xf32>
    %c0_3 = arith.constant 0 : index
    %c0_4 = arith.constant 0 : index
    %2 = vector.load %arg2[%c0_3, %c0_4] : memref<32x32xf32, #tpu.memory_space<vmem>>, vector<32x32xf32>
    %c0_5 = arith.constant 0 : index
    %c0_6 = arith.constant 0 : index
    %3 = vector.load %arg3[%c0_5, %c0_6] : memref<32x64xf32, #tpu.memory_space<vmem>>, vector<32x64xf32>
    %c0_7 = arith.constant 0 : index
    %c0_8 = arith.constant 0 : index
    %4 = vector.load %arg4[%c0_7, %c0_8] : memref<64x32xf32, #tpu.memory_space<vmem>>, vector<64x32xf32>
    %c0_9 = arith.constant 0 : index
    %c0_10 = arith.constant 0 : index
    %5 = vector.load %arg5[%c0_9, %c0_10] : memref<8x128xf32, #tpu.memory_space<vmem>>, vector<8x128xf32>
    %6 = vector.extract_strided_slice %5 {offsets = [0, 0], sizes = [1, 96], strides = [1, 1]} : vector<8x128xf32> to vector<1x96xf32>
    %7 = vector.extract_strided_slice %5 {offsets = [1, 0], sizes = [1, 32], strides = [1, 1]} : vector<8x128xf32> to vector<1x32xf32>
    %8 = vector.extract_strided_slice %5 {offsets = [2, 0], sizes = [1, 32], strides = [1, 1]} : vector<8x128xf32> to vector<1x32xf32>
    %9 = vector.extract_strided_slice %5 {offsets = [3, 0], sizes = [1, 32], strides = [1, 1]} : vector<8x128xf32> to vector<1x32xf32>
    %10 = vector.extract_strided_slice %5 {offsets = [4, 0], sizes = [1, 64], strides = [1, 1]} : vector<8x128xf32> to vector<1x64xf32>
    %11 = vector.extract_strided_slice %5 {offsets = [5, 0], sizes = [1, 32], strides = [1, 1]} : vector<8x128xf32> to vector<1x32xf32>
    %12 = vector.extract_strided_slice %5 {offsets = [6, 0], sizes = [1, 32], strides = [1, 1]} : vector<8x128xf32> to vector<1x32xf32>
    %13 = vector.extract_strided_slice %5 {offsets = [7, 0], sizes = [1, 32], strides = [1, 1]} : vector<8x128xf32> to vector<1x32xf32>
    %cst = arith.constant dense<0.000000e+00> : vector<16x96xf32>
    %14 = tpu.matmul %0, %1, %cst {dimension_numbers = #tpu.dot_dimension_numbers<[1], [0], [0], [1], [0, 0, 1, 1], [], []>} : vector<16x32xf32>, vector<32x96xf32>, vector<16x96xf32> -> vector<16x96xf32>
    %15 = vector.broadcast %6 : vector<1x96xf32> to vector<16x96xf32>
    %16 = arith.addf %14, %15 : vector<16x96xf32>
    %cst_11 = arith.constant 0.000000e+00 : f32
    %17 = vector.broadcast %cst_11 : f32 to vector<16x32xf32>
    %18 = vector.extract_strided_slice %16 {offsets = [0, 0], sizes = [16, 8], strides = [1, 1]} : vector<16x96xf32> to vector<16x8xf32>
    %19 = vector.shape_cast %18 : vector<16x8xf32> to vector<2x8x8xf32>
    %20 = vector.extract_strided_slice %16 {offsets = [0, 32], sizes = [16, 8], strides = [1, 1]} : vector<16x96xf32> to vector<16x8xf32>
    %21 = vector.shape_cast %20 : vector<16x8xf32> to vector<2x8x8xf32>
    %22 = vector.extract_strided_slice %16 {offsets = [0, 64], sizes = [16, 8], strides = [1, 1]} : vector<16x96xf32> to vector<16x8xf32>
    %23 = vector.shape_cast %22 : vector<16x8xf32> to vector<2x8x8xf32>
    "tpu.trace_start"() <{level = 10 : i32, message = "bqd,bkd->bqk"}> : () -> ()
    %cst_12 = arith.constant dense<0.000000e+00> : vector<2x8x8xf32>
    %24 = tpu.matmul %19, %21, %cst_12 {dimension_numbers = #tpu.dot_dimension_numbers<[2], [2], [1], [1], [0, 0, 0, 1, 1, 1], [0], [0]>} : vector<2x8x8xf32>, vector<2x8x8xf32>, vector<2x8x8xf32> -> vector<2x8x8xf32>
    "tpu.trace_stop"() : () -> ()
    %cst_13 = arith.constant dense<0xFF800000> : vector<2x8xf32>
    %25 = vector.multi_reduction <maximumf>, %24, %cst_13 [2] : vector<2x8x8xf32> to vector<2x8xf32>
    %26 = vector.shape_cast %25 : vector<2x8xf32> to vector<2x8x1xf32>
    %27 = vector.broadcast %26 : vector<2x8x1xf32> to vector<2x8x8xf32>
    %28 = arith.subf %24, %27 : vector<2x8x8xf32>
    %29 = math.exp %28 : vector<2x8x8xf32>
    %cst_14 = arith.constant dense<0.000000e+00> : vector<2x8xf32>
    %30 = vector.multi_reduction <add>, %29, %cst_14 [2] : vector<2x8x8xf32> to vector<2x8xf32>
    %31 = vector.shape_cast %30 : vector<2x8xf32> to vector<2x8x1xf32>
    %32 = vector.broadcast %31 : vector<2x8x1xf32> to vector<2x8x8xf32>
    %33 = arith.divf %29, %32 : vector<2x8x8xf32>
    "tpu.trace_start"() <{level = 10 : i32, message = "bqk,bkd->bqd"}> : () -> ()
    %cst_15 = arith.constant dense<0.000000e+00> : vector<2x8x8xf32>
    %34 = tpu.matmul %33, %23, %cst_15 {dimension_numbers = #tpu.dot_dimension_numbers<[2], [1], [1], [2], [0, 0, 0, 1, 1, 2], [0], [0]>} : vector<2x8x8xf32>, vector<2x8x8xf32>, vector<2x8x8xf32> -> vector<2x8x8xf32>
    "tpu.trace_stop"() : () -> ()
    %35 = vector.shape_cast %34 : vector<2x8x8xf32> to vector<16x8xf32>
    %36 = vector.extract_strided_slice %2 {offsets = [0, 0], sizes = [8, 32], strides = [1, 1]} : vector<32x32xf32> to vector<8x32xf32>
    %cst_16 = arith.constant dense<0.000000e+00> : vector<16x32xf32>
    %37 = tpu.matmul %35, %36, %cst_16 {dimension_numbers = #tpu.dot_dimension_numbers<[1], [0], [0], [1], [0, 0, 1, 1], [], []>} : vector<16x8xf32>, vector<8x32xf32>, vector<16x32xf32> -> vector<16x32xf32>
    %38 = arith.addf %17, %37 : vector<16x32xf32>
    %39 = vector.extract_strided_slice %16 {offsets = [0, 8], sizes = [16, 8], strides = [1, 1]} : vector<16x96xf32> to vector<16x8xf32>
    %40 = vector.shape_cast %39 : vector<16x8xf32> to vector<2x8x8xf32>
    %41 = vector.extract_strided_slice %16 {offsets = [0, 40], sizes = [16, 8], strides = [1, 1]} : vector<16x96xf32> to vector<16x8xf32>
    %42 = vector.shape_cast %41 : vector<16x8xf32> to vector<2x8x8xf32>
    %43 = vector.extract_strided_slice %16 {offsets = [0, 72], sizes = [16, 8], strides = [1, 1]} : vector<16x96xf32> to vector<16x8xf32>
    %44 = vector.shape_cast %43 : vector<16x8xf32> to vector<2x8x8xf32>
    "tpu.trace_start"() <{level = 10 : i32, message = "bqd,bkd->bqk"}> : () -> ()
    %cst_17 = arith.constant dense<0.000000e+00> : vector<2x8x8xf32>
    %45 = tpu.matmul %40, %42, %cst_17 {dimension_numbers = #tpu.dot_dimension_numbers<[2], [2], [1], [1], [0, 0, 0, 1, 1, 1], [0], [0]>} : vector<2x8x8xf32>, vector<2x8x8xf32>, vector<2x8x8xf32> -> vector<2x8x8xf32>
    "tpu.trace_stop"() : () -> ()
    %cst_18 = arith.constant dense<0xFF800000> : vector<2x8xf32>
    %46 = vector.multi_reduction <maximumf>, %45, %cst_18 [2] : vector<2x8x8xf32> to vector<2x8xf32>
    %47 = vector.shape_cast %46 : vector<2x8xf32> to vector<2x8x1xf32>
    %48 = vector.broadcast %47 : vector<2x8x1xf32> to vector<2x8x8xf32>
    %49 = arith.subf %45, %48 : vector<2x8x8xf32>
    %50 = math.exp %49 : vector<2x8x8xf32>
    %cst_19 = arith.constant dense<0.000000e+00> : vector<2x8xf32>
    %51 = vector.multi_reduction <add>, %50, %cst_19 [2] : vector<2x8x8xf32> to vector<2x8xf32>
    %52 = vector.shape_cast %51 : vector<2x8xf32> to vector<2x8x1xf32>
    %53 = vector.broadcast %52 : vector<2x8x1xf32> to vector<2x8x8xf32>
    %54 = arith.divf %50, %53 : vector<2x8x8xf32>
    "tpu.trace_start"() <{level = 10 : i32, message = "bqk,bkd->bqd"}> : () -> ()
    %cst_20 = arith.constant dense<0.000000e+00> : vector<2x8x8xf32>
    %55 = tpu.matmul %54, %44, %cst_20 {dimension_numbers = #tpu.dot_dimension_numbers<[2], [1], [1], [2], [0, 0, 0, 1, 1, 2], [0], [0]>} : vector<2x8x8xf32>, vector<2x8x8xf32>, vector<2x8x8xf32> -> vector<2x8x8xf32>
    "tpu.trace_stop"() : () -> ()
    %56 = vector.shape_cast %55 : vector<2x8x8xf32> to vector<16x8xf32>
    %57 = vector.extract_strided_slice %2 {offsets = [8, 0], sizes = [8, 32], strides = [1, 1]} : vector<32x32xf32> to vector<8x32xf32>
    %cst_21 = arith.constant dense<0.000000e+00> : vector<16x32xf32>
    %58 = tpu.matmul %56, %57, %cst_21 {dimension_numbers = #tpu.dot_dimension_numbers<[1], [0], [0], [1], [0, 0, 1, 1], [], []>} : vector<16x8xf32>, vector<8x32xf32>, vector<16x32xf32> -> vector<16x32xf32>
    %59 = arith.addf %38, %58 : vector<16x32xf32>
    %60 = vector.extract_strided_slice %16 {offsets = [0, 16], sizes = [16, 8], strides = [1, 1]} : vector<16x96xf32> to vector<16x8xf32>
    %61 = vector.shape_cast %60 : vector<16x8xf32> to vector<2x8x8xf32>
    %62 = vector.extract_strided_slice %16 {offsets = [0, 48], sizes = [16, 8], strides = [1, 1]} : vector<16x96xf32> to vector<16x8xf32>
    %63 = vector.shape_cast %62 : vector<16x8xf32> to vector<2x8x8xf32>
    %64 = vector.extract_strided_slice %16 {offsets = [0, 80], sizes = [16, 8], strides = [1, 1]} : vector<16x96xf32> to vector<16x8xf32>
    %65 = vector.shape_cast %64 : vector<16x8xf32> to vector<2x8x8xf32>
    "tpu.trace_start"() <{level = 10 : i32, message = "bqd,bkd->bqk"}> : () -> ()
    %cst_22 = arith.constant dense<0.000000e+00> : vector<2x8x8xf32>
    %66 = tpu.matmul %61, %63, %cst_22 {dimension_numbers = #tpu.dot_dimension_numbers<[2], [2], [1], [1], [0, 0, 0, 1, 1, 1], [0], [0]>} : vector<2x8x8xf32>, vector<2x8x8xf32>, vector<2x8x8xf32> -> vector<2x8x8xf32>
    "tpu.trace_stop"() : () -> ()
    %cst_23 = arith.constant dense<0xFF800000> : vector<2x8xf32>
    %67 = vector.multi_reduction <maximumf>, %66, %cst_23 [2] : vector<2x8x8xf32> to vector<2x8xf32>
    %68 = vector.shape_cast %67 : vector<2x8xf32> to vector<2x8x1xf32>
    %69 = vector.broadcast %68 : vector<2x8x1xf32> to vector<2x8x8xf32>
    %70 = arith.subf %66, %69 : vector<2x8x8xf32>
    %71 = math.exp %70 : vector<2x8x8xf32>
    %cst_24 = arith.constant dense<0.000000e+00> : vector<2x8xf32>
    %72 = vector.multi_reduction <add>, %71, %cst_24 [2] : vector<2x8x8xf32> to vector<2x8xf32>
    %73 = vector.shape_cast %72 : vector<2x8xf32> to vector<2x8x1xf32>
    %74 = vector.broadcast %73 : vector<2x8x1xf32> to vector<2x8x8xf32>
    %75 = arith.divf %71, %74 : vector<2x8x8xf32>
    "tpu.trace_start"() <{level = 10 : i32, message = "bqk,bkd->bqd"}> : () -> ()
    %cst_25 = arith.constant dense<0.000000e+00> : vector<2x8x8xf32>
    %76 = tpu.matmul %75, %65, %cst_25 {dimension_numbers = #tpu.dot_dimension_numbers<[2], [1], [1], [2], [0, 0, 0, 1, 1, 2], [0], [0]>} : vector<2x8x8xf32>, vector<2x8x8xf32>, vector<2x8x8xf32> -> vector<2x8x8xf32>
    "tpu.trace_stop"() : () -> ()
    %77 = vector.shape_cast %76 : vector<2x8x8xf32> to vector<16x8xf32>
    %78 = vector.extract_strided_slice %2 {offsets = [16, 0], sizes = [8, 32], strides = [1, 1]} : vector<32x32xf32> to vector<8x32xf32>
    %cst_26 = arith.constant dense<0.000000e+00> : vector<16x32xf32>
    %79 = tpu.matmul %77, %78, %cst_26 {dimension_numbers = #tpu.dot_dimension_numbers<[1], [0], [0], [1], [0, 0, 1, 1], [], []>} : vector<16x8xf32>, vector<8x32xf32>, vector<16x32xf32> -> vector<16x32xf32>
    %80 = arith.addf %59, %79 : vector<16x32xf32>
    %81 = vector.extract_strided_slice %16 {offsets = [0, 24], sizes = [16, 8], strides = [1, 1]} : vector<16x96xf32> to vector<16x8xf32>
    %82 = vector.shape_cast %81 : vector<16x8xf32> to vector<2x8x8xf32>
    %83 = vector.extract_strided_slice %16 {offsets = [0, 56], sizes = [16, 8], strides = [1, 1]} : vector<16x96xf32> to vector<16x8xf32>
    %84 = vector.shape_cast %83 : vector<16x8xf32> to vector<2x8x8xf32>
    %85 = vector.extract_strided_slice %16 {offsets = [0, 88], sizes = [16, 8], strides = [1, 1]} : vector<16x96xf32> to vector<16x8xf32>
    %86 = vector.shape_cast %85 : vector<16x8xf32> to vector<2x8x8xf32>
    "tpu.trace_start"() <{level = 10 : i32, message = "bqd,bkd->bqk"}> : () -> ()
    %cst_27 = arith.constant dense<0.000000e+00> : vector<2x8x8xf32>
    %87 = tpu.matmul %82, %84, %cst_27 {dimension_numbers = #tpu.dot_dimension_numbers<[2], [2], [1], [1], [0, 0, 0, 1, 1, 1], [0], [0]>} : vector<2x8x8xf32>, vector<2x8x8xf32>, vector<2x8x8xf32> -> vector<2x8x8xf32>
    "tpu.trace_stop"() : () -> ()
    %cst_28 = arith.constant dense<0xFF800000> : vector<2x8xf32>
    %88 = vector.multi_reduction <maximumf>, %87, %cst_28 [2] : vector<2x8x8xf32> to vector<2x8xf32>
    %89 = vector.shape_cast %88 : vector<2x8xf32> to vector<2x8x1xf32>
    %90 = vector.broadcast %89 : vector<2x8x1xf32> to vector<2x8x8xf32>
    %91 = arith.subf %87, %90 : vector<2x8x8xf32>
    %92 = math.exp %91 : vector<2x8x8xf32>
    %cst_29 = arith.constant dense<0.000000e+00> : vector<2x8xf32>
    %93 = vector.multi_reduction <add>, %92, %cst_29 [2] : vector<2x8x8xf32> to vector<2x8xf32>
    %94 = vector.shape_cast %93 : vector<2x8xf32> to vector<2x8x1xf32>
    %95 = vector.broadcast %94 : vector<2x8x1xf32> to vector<2x8x8xf32>
    %96 = arith.divf %92, %95 : vector<2x8x8xf32>
    "tpu.trace_start"() <{level = 10 : i32, message = "bqk,bkd->bqd"}> : () -> ()
    %cst_30 = arith.constant dense<0.000000e+00> : vector<2x8x8xf32>
    %97 = tpu.matmul %96, %86, %cst_30 {dimension_numbers = #tpu.dot_dimension_numbers<[2], [1], [1], [2], [0, 0, 0, 1, 1, 2], [0], [0]>} : vector<2x8x8xf32>, vector<2x8x8xf32>, vector<2x8x8xf32> -> vector<2x8x8xf32>
    "tpu.trace_stop"() : () -> ()
    %98 = vector.shape_cast %97 : vector<2x8x8xf32> to vector<16x8xf32>
    %99 = vector.extract_strided_slice %2 {offsets = [24, 0], sizes = [8, 32], strides = [1, 1]} : vector<32x32xf32> to vector<8x32xf32>
    %cst_31 = arith.constant dense<0.000000e+00> : vector<16x32xf32>
    %100 = tpu.matmul %98, %99, %cst_31 {dimension_numbers = #tpu.dot_dimension_numbers<[1], [0], [0], [1], [0, 0, 1, 1], [], []>} : vector<16x8xf32>, vector<8x32xf32>, vector<16x32xf32> -> vector<16x32xf32>
    %101 = arith.addf %80, %100 : vector<16x32xf32>
    %102 = vector.broadcast %7 : vector<1x32xf32> to vector<16x32xf32>
    %103 = arith.addf %101, %102 : vector<16x32xf32>
    %104 = arith.addf %0, %103 : vector<16x32xf32>
    %cst_32 = arith.constant dense<0.000000e+00> : vector<16xf32>
    %105 = vector.multi_reduction <add>, %104, %cst_32 [1] : vector<16x32xf32> to vector<16xf32>
    %106 = vector.shape_cast %105 : vector<16xf32> to vector<16x1xf32>
    %cst_33 = arith.constant 3.200000e+01 : f32
    %107 = vector.broadcast %cst_33 : f32 to vector<16x1xf32>
    %108 = arith.divf %106, %107 : vector<16x1xf32>
    %109 = arith.mulf %104, %104 : vector<16x32xf32>
    %cst_34 = arith.constant dense<0.000000e+00> : vector<16xf32>
    %110 = vector.multi_reduction <add>, %109, %cst_34 [1] : vector<16x32xf32> to vector<16xf32>
    %111 = vector.shape_cast %110 : vector<16xf32> to vector<16x1xf32>
    %cst_35 = arith.constant 3.200000e+01 : f32
    %112 = vector.broadcast %cst_35 : f32 to vector<16x1xf32>
    %113 = arith.divf %111, %112 : vector<16x1xf32>
    %114 = arith.mulf %108, %108 : vector<16x1xf32>
    %115 = arith.subf %113, %114 : vector<16x1xf32>
    %116 = vector.broadcast %108 : vector<16x1xf32> to vector<16x32xf32>
    %117 = arith.subf %104, %116 : vector<16x32xf32>
    %cst_36 = arith.constant 9.99999974E-6 : f32
    %118 = vector.broadcast %cst_36 : f32 to vector<16x1xf32>
    %119 = arith.addf %115, %118 : vector<16x1xf32>
    %120 = math.rsqrt %119 : vector<16x1xf32>
    %121 = vector.broadcast %120 : vector<16x1xf32> to vector<16x32xf32>
    %122 = arith.mulf %117, %121 : vector<16x32xf32>
    %123 = vector.broadcast %8 : vector<1x32xf32> to vector<16x32xf32>
    %124 = arith.mulf %122, %123 : vector<16x32xf32>
    %125 = vector.broadcast %9 : vector<1x32xf32> to vector<16x32xf32>
    %126 = arith.addf %124, %125 : vector<16x32xf32>
    %cst_37 = arith.constant dense<0.000000e+00> : vector<16x64xf32>
    %127 = tpu.matmul %126, %3, %cst_37 {dimension_numbers = #tpu.dot_dimension_numbers<[1], [0], [0], [1], [0, 0, 1, 1], [], []>} : vector<16x32xf32>, vector<32x64xf32>, vector<16x64xf32> -> vector<16x64xf32>
    %128 = vector.broadcast %10 : vector<1x64xf32> to vector<16x64xf32>
    %129 = arith.addf %127, %128 : vector<16x64xf32>
    %cst_38 = arith.constant 0.000000e+00 : f32
    %130 = vector.broadcast %cst_38 : f32 to vector<16x64xf32>
    %131 = arith.maximumf %129, %130 : vector<16x64xf32>
    %cst_39 = arith.constant dense<0.000000e+00> : vector<16x32xf32>
    %132 = tpu.matmul %131, %4, %cst_39 {dimension_numbers = #tpu.dot_dimension_numbers<[1], [0], [0], [1], [0, 0, 1, 1], [], []>} : vector<16x64xf32>, vector<64x32xf32>, vector<16x32xf32> -> vector<16x32xf32>
    %133 = vector.broadcast %11 : vector<1x32xf32> to vector<16x32xf32>
    %134 = arith.addf %132, %133 : vector<16x32xf32>
    %135 = arith.addf %126, %134 : vector<16x32xf32>
    %cst_40 = arith.constant dense<0.000000e+00> : vector<16xf32>
    %136 = vector.multi_reduction <add>, %135, %cst_40 [1] : vector<16x32xf32> to vector<16xf32>
    %137 = vector.shape_cast %136 : vector<16xf32> to vector<16x1xf32>
    %cst_41 = arith.constant 3.200000e+01 : f32
    %138 = vector.broadcast %cst_41 : f32 to vector<16x1xf32>
    %139 = arith.divf %137, %138 : vector<16x1xf32>
    %140 = arith.mulf %135, %135 : vector<16x32xf32>
    %cst_42 = arith.constant dense<0.000000e+00> : vector<16xf32>
    %141 = vector.multi_reduction <add>, %140, %cst_42 [1] : vector<16x32xf32> to vector<16xf32>
    %142 = vector.shape_cast %141 : vector<16xf32> to vector<16x1xf32>
    %cst_43 = arith.constant 3.200000e+01 : f32
    %143 = vector.broadcast %cst_43 : f32 to vector<16x1xf32>
    %144 = arith.divf %142, %143 : vector<16x1xf32>
    %145 = arith.mulf %139, %139 : vector<16x1xf32>
    %146 = arith.subf %144, %145 : vector<16x1xf32>
    %147 = vector.broadcast %139 : vector<16x1xf32> to vector<16x32xf32>
    %148 = arith.subf %135, %147 : vector<16x32xf32>
    %cst_44 = arith.constant 9.99999974E-6 : f32
    %149 = vector.broadcast %cst_44 : f32 to vector<16x1xf32>
    %150 = arith.addf %146, %149 : vector<16x1xf32>
    %151 = math.rsqrt %150 : vector<16x1xf32>
    %152 = vector.broadcast %151 : vector<16x1xf32> to vector<16x32xf32>
    %153 = arith.mulf %148, %152 : vector<16x32xf32>
    %154 = vector.broadcast %12 : vector<1x32xf32> to vector<16x32xf32>
    %155 = arith.mulf %153, %154 : vector<16x32xf32>
    %156 = vector.broadcast %13 : vector<1x32xf32> to vector<16x32xf32>
    %157 = arith.addf %155, %156 : vector<16x32xf32>
    %c0_45 = arith.constant 0 : index
    %c0_46 = arith.constant 0 : index
    %158 = vector.load %arg6[%c0_45, %c0_46] : memref<16x32xf32, #tpu.memory_space<vmem>>, vector<16x32xf32>
    tpu.vector_store %arg6[%c0_45, %c0_46], %157 {strides = array<i32>} : memref<16x32xf32, #tpu.memory_space<vmem>>, vector<16x32xf32>,
    return
  }
}

</mosaic_0001>

<llo_original>
// kernel: tpu_custom_call.1
$region0: #{tpu_custom_call.1}
  #allocation0 [shape = 'u32[]', space=smem, size = 0x4, offset = 0x4, fixed_abs, tag = 'smem constant byte address 0x4 - core index']
  #allocation1 [shape = 'u32[72,128]{1,0:T(1,128)}', space=vmem, size = 0x9000, scoped, tag = 'internal scratch']
  %s0 = inlined_call_operand.hbm [shape: f32[16,32], index: 0, kind: input, shape index: {}]
  %s1 = inlined_call_operand.vmem [shape: f32[32,96], index: 1, kind: input, shape index: {}]
  %s2 = inlined_call_operand.vmem [shape: f32[32,32], index: 2, kind: input, shape index: {}]
  %s3 = inlined_call_operand.vmem [shape: f32[32,64], index: 3, kind: input, shape index: {}]
  %s4 = inlined_call_operand.vmem [shape: f32[64,32], index: 4, kind: input, shape index: {}]
  %s5 = inlined_call_operand.hbm [shape: f32[8,128], index: 5, kind: input, shape index: {}]
  %s6 = inlined_call_operand.hbm [shape: f32[16,32], index: 6, kind: output, shape index: {}]
  %s7 = sld [smem:[#allocation0]]
  $region42: #{tpu_custom_call.1} parent=0
    _
  %s9 = ssub.s32 1, %s7
  %s10 = scalar_select 0, %s9, %s7
  $region1: #{tpu_custom_call.1} parent=0
    #allocation2 [shape = 'u8[8192]{0}', space=vmem, size = 0x2000, scoped, tag = 'input window, operand 0, single buffered']
    #allocation3 [shape = 's32[1]{0}', space=sflag, size = 0x4, scoped, tag = 'scoped memory for tpu_custom_call.1']
    #allocation4 [shape = 's32[1]{0}', space=sflag, size = 0x4, scoped, tag = 'scoped memory for tpu_custom_call.1']
    #allocation5 [shape = 'u8[4096]{0}', space=vmem, size = 0x1000, scoped, tag = 'input window, operand 5, single buffered']
    #allocation6 [shape = 's32[1]{0}', space=sflag, size = 0x4, scoped, tag = 'scoped memory for tpu_custom_call.1']
    #allocation7 [shape = 'u8[8192]{0}', space=vmem, size = 0x2000, scoped, tag = 'output window, operand 0, single buffered']
    %11 = vsyncpa [#allocation3], 0
    %12 = vsyncpa [#allocation6], 0
    %13 = vsyncpa [#allocation4], 0
    // Predicated region
    $region2: #{tpu_custom_call.1} parent=1 // pred_check
      _
    $region3: #{tpu_custom_call.1} parent=1 // pred_check_branch
      %15 = sbr.rel (0) target = $region5
    $region4: #{tpu_custom_call.1} parent=1 // pred_region
      %17 = vsyncadd [#allocation3], 0
      %s18 = sshll.u32 %s0, 4
      %s19 = int_to_ptr.hbm [resolvable:$true] %s18
      %s20 = sshll.u32 [#allocation2], 4
      %s21 = int_to_ptr.vmem [resolvable:$true] %s20
      %26 = dma.hbm_to_vmem [thread:$0]  %s19, 256, %s21, [#allocation3], 128, 128, 8
    $region5: #{tpu_custom_call.1} parent=1 // pred_fallthru
      _
    // Predicated region
    $region6: #{tpu_custom_call.1} parent=1 // pred_check
      _
    $region7: #{tpu_custom_call.1} parent=1 // pred_check_branch
      %28 = sbr.rel (0) target = $region9
    $region8: #{tpu_custom_call.1} parent=1 // pred_region
      _
    $region9: #{tpu_custom_call.1} parent=1 // pred_fallthru
      _
    // Predicated region
    $region10: #{tpu_custom_call.1} parent=1 // pred_check
      _
    $region11: #{tpu_custom_call.1} parent=1 // pred_check_branch
      %30 = sbr.rel (0) target = $region13
    $region12: #{tpu_custom_call.1} parent=1 // pred_region
      _
    $region13: #{tpu_custom_call.1} parent=1 // pred_fallthru
      _
    // Predicated region
    $region14: #{tpu_custom_call.1} parent=1 // pred_check
      _
    $region15: #{tpu_custom_call.1} parent=1 // pred_check_branch
      %32 = sbr.rel (0) target = $region17
    $region16: #{tpu_custom_call.1} parent=1 // pred_region
      _
    $region17: #{tpu_custom_call.1} parent=1 // pred_fallthru
      _
    // Predicated region
    $region18: #{tpu_custom_call.1} parent=1 // pred_check
      _
    $region19: #{tpu_custom_call.1} parent=1 // pred_check_branch
      %34 = sbr.rel (0) target = $region21
    $region20: #{tpu_custom_call.1} parent=1 // pred_region
      _
    $region21: #{tpu_custom_call.1} parent=1 // pred_fallthru
      _
    // Predicated region
    $region22: #{tpu_custom_call.1} parent=1 // pred_check
      _
    $region23: #{tpu_custom_call.1} parent=1 // pred_check_branch
      %36 = sbr.rel (0) target = $region25
    $region24: #{tpu_custom_call.1} parent=1 // pred_region
      %38 = vsyncadd [#allocation6], 0
      %s40 = sshll.u32 %s5, 4
      %s41 = int_to_ptr.hbm [resolvable:$true] %s40
      %s42 = sshll.u32 [#allocation5], 4
      %s43 = int_to_ptr.vmem [resolvable:$true] %s42
      %45 = dma.hbm_to_vmem [thread:$0]  %s41, 128, %s43, [#allocation6]
    $region25: #{tpu_custom_call.1} parent=1 // pred_fallthru
      _
    // Predicated region
    $region26: #{tpu_custom_call.1} parent=1 // pred_check
      _
    $region27: #{tpu_custom_call.1} parent=1 // pred_check_branch
      %47 = sbr.rel (0) target = $region29
    $region28: #{tpu_custom_call.1} parent=1 // pred_region
      %49 = dma.done [#allocation3], 256
    $region29: #{tpu_custom_call.1} parent=1 // pred_fallthru
      _
    // Predicated region
    $region30: #{tpu_custom_call.1} parent=1 // pred_check
      _
    $region31: #{tpu_custom_call.1} parent=1 // pred_check_branch
      %51 = sbr.rel (0) target = $region33
    $region32: #{tpu_custom_call.1} parent=1 // pred_region
      %53 = dma.done [#allocation6], 128
    $region33: #{tpu_custom_call.1} parent=1 // pred_fallthru
      _
    %v54 = vld [vmem:[#allocation2] sm:$0xff]
    %v55 = vld [vmem:[#allocation2 + $0x8] sm:$0xff]
    %v56 = vld [vmem:[%s1] sm:$0xff]
    %v57 = vld [vmem:[%s1 + $0x8] sm:$0xff]
    %v58 = vld [vmem:[%s1 + $0x10] sm:$0xff]
    %v59 = vld [vmem:[%s1 + $0x18] sm:$0xff]
    %v60 = vld [vmem:[%s2] sm:$0xff]
    %v61 = vld [vmem:[%s2 + $0x8] sm:$0xff]
    %v62 = vld [vmem:[%s2 + $0x10] sm:$0xff]
    %v63 = vld [vmem:[%s2 + $0x18] sm:$0xff]
    %v64 = vld [vmem:[%s3] sm:$0xff]
    %v65 = vld [vmem:[%s3 + $0x8] sm:$0xff]
    %v66 = vld [vmem:[%s3 + $0x10] sm:$0xff]
    %v67 = vld [vmem:[%s3 + $0x18] sm:$0xff]
    %v68 = vld [vmem:[%s4] sm:$0xff]
    %v69 = vld [vmem:[%s4 + $0x8] sm:$0xff]
    %v70 = vld [vmem:[%s4 + $0x10] sm:$0xff]
    %v71 = vld [vmem:[%s4 + $0x18] sm:$0xff]
    %v72 = vld [vmem:[%s4 + $0x20] sm:$0xff]
    %v73 = vld [vmem:[%s4 + $0x28] sm:$0xff]
    %v74 = vld [vmem:[%s4 + $0x30] sm:$0xff]
    %v75 = vld [vmem:[%s4 + $0x38] sm:$0xff]
    %v76 = vld [vmem:[#allocation5] sm:$0xff]
    %v77 = vperm.slane %v76, 0
    %vm78 = vcmask 261120
    %v80 = vsel %vm78, %v54, 0
    %v83 = vsel %vm78, %v55, 0
    %85 = vmatpush.msra.mxu0 0.0
    %86 = vmatpush.msra.mxu0 0.0
    %87 = vmatpush.msra.mxu0 0.0
    %88 = vmatpush.msra.mxu0 0.0
    %89 = vmatpush.msra.mxu0 0.0
    %90 = vmatpush.msra.mxu0 0.0
    %91 = vmatpush.msra.mxu0 0.0
    %92 = vmatpush.msra.mxu0 0.0
    %93 = vmatpush.msra.mxu0 0.0
    %94 = vmatpush.msra.mxu0 0.0
    %95 = vmatpush.msra.mxu0 0.0
    %96 = vmatpush.msra.mxu0 0.0
    %97 = vmatpush.msra.mxu0 %v59
    %98 = vmatpush.msra.mxu0 %v58
    %99 = vmatpush.msra.mxu0 %v57
    %100 = vmatpush.msra.mxu0 %v56
    %101 = vmatmul.f32.gmra.mxu0 %v80
    %v102 = vpop.f32.mrf.mxu0
    %v103 = vadd.f32 %v77, %v102
    %104 = vmatmul.f32.gmra.mxu0 %v83
    %v105 = vpop.f32.mrf.mxu0
    %v106 = vadd.f32 %v77, %v105
    %107 = vdwg.mxu0
    %109 = vrot.lane.b32.xlu0 %v103, 96
    %v110 = vpop.permute.xlu0 %109
    %vm111 = vcmask 64512
    %v112 = vsel %vm111, %v103, 0
    %v114 = vsel %vm111, %v110, 0
    %116 = vmatpush.xpose.msra.mxu0 0.0
    %117 = vmatpush.xpose.msra.mxu0 0.0
    %118 = vmatpush.xpose.msra.mxu0 0.0
    %119 = vmatpush.xpose.msra.mxu0 0.0
    %120 = vmatpush.xpose.msra.mxu0 0.0
    %121 = vmatpush.xpose.msra.mxu0 0.0
    %122 = vmatpush.xpose.msra.mxu0 0.0
    %123 = vmatpush.xpose.msra.mxu0 0.0
    %124 = vmatpush.xpose.msra.mxu0 0.0
    %125 = vmatpush.xpose.msra.mxu0 0.0
    %126 = vmatpush.xpose.msra.mxu0 0.0
    %127 = vmatpush.xpose.msra.mxu0 0.0
    %128 = vmatpush.xpose.msra.mxu0 0.0
    %129 = vmatpush.xpose.msra.mxu0 0.0
    %130 = vmatpush.xpose.msra.mxu0 0.0
    %131 = vmatpush.xpose.msra.mxu0 %v114
    %132 = vmatmul.f32.gmra.mxu0 %v112
    %v133 = vpop.f32.mrf.mxu0
    %v134 = vadd.f32 0.0, %v133
    %135 = vdwg.mxu0
    %137 = vrot.lane.b32.xlu0 %v106, 96
    %v138 = vpop.permute.xlu0 %137
    %v139 = vsel %vm111, %v106, 0
    %v141 = vsel %vm111, %v138, 0
    %143 = vmatpush.xpose.msra.mxu0 0.0
    %144 = vmatpush.xpose.msra.mxu0 0.0
    %145 = vmatpush.xpose.msra.mxu0 0.0
    %146 = vmatpush.xpose.msra.mxu0 0.0
    %147 = vmatpush.xpose.msra.mxu0 0.0
    %148 = vmatpush.xpose.msra.mxu0 0.0
    %149 = vmatpush.xpose.msra.mxu0 0.0
    %150 = vmatpush.xpose.msra.mxu0 0.0
    %151 = vmatpush.xpose.msra.mxu0 0.0
    %152 = vmatpush.xpose.msra.mxu0 0.0
    %153 = vmatpush.xpose.msra.mxu0 0.0
    %154 = vmatpush.xpose.msra.mxu0 0.0
    %155 = vmatpush.xpose.msra.mxu0 0.0
    %156 = vmatpush.xpose.msra.mxu0 0.0
    %157 = vmatpush.xpose.msra.mxu0 0.0
    %158 = vmatpush.xpose.msra.mxu0 %v141
    %159 = vmatmul.f32.gmra.mxu0 %v139
    %v160 = vpop.f32.mrf.mxu0
    %v161 = vadd.f32 0.0, %v160
    %162 = vdwg.mxu0
    %v163 = vsel %vm111, %v134, -inf
    %164 = vmax.xlane.f32.xlu0 %v163
    %v165 = vpop.xlane.xlu0 %164
    %v166 = vsel %vm111, %v161, -inf
    %167 = vmax.xlane.f32.xlu0 %v166
    %v168 = vpop.xlane.xlu0 %167
    %v169 = vsub.f32 %v134, %v165
    %v170 = vsub.f32 %v161, %v168
    %v171 = vmul.f32 %v169, 1.442695
    %v172 = vpow.pop %v171
    %v173 = vmul.f32 %v170, 1.442695
    %v174 = vpow.pop %v173
    %v175 = vsel %vm111, %v172, 0.0
    %176 = vadd.xlane.f32.xlu0 %v175
    %v177 = vpop.xlane.xlu0 %176
    %v178 = vsel %vm111, %v174, 0.0
    %179 = vadd.xlane.f32.xlu0 %v178
    %v180 = vpop.xlane.xlu0 %179
    %v181 = vrcp.pop %v177
    %v182 = vmul.f32 %v177, %v181
    %v183 = vsub.f32 1.0, %v182
    %v184 = vmul.f32 %v181, %v183
    %v185 = vadd.f32 %v181, %v184
    %vm186 = vweird.f32 %v177
    %vm187 = vweird.f32 %v181
    %vm188 = vmor %vm186, %vm187
    %v189 = vsel %vm188, %v181, %v185
    %v190 = vand.u32 2147483647, %v177
    %vm191 = vcmp.eq.f32.partialorder %v190, 8.507059e+37
    %v192 = vand.u32 %v177, 2147483648
    %v193 = vor.u32 1.1754944e-38, %v192
    %v194 = vsel %vm191, %v193, %v189
    %v195 = vmul.f32 %v172, %v194
    %v196 = vrcp.pop %v180
    %v197 = vmul.f32 %v180, %v196
    %v198 = vsub.f32 1.0, %v197
    %v199 = vmul.f32 %v196, %v198
    %v200 = vadd.f32 %v196, %v199
    %vm201 = vweird.f32 %v180
    %vm202 = vweird.f32 %v196
    %vm203 = vmor %vm201, %vm202
    %v204 = vsel %vm203, %v196, %v200
    %v205 = vand.u32 2147483647, %v180
    %vm206 = vcmp.eq.f32.partialorder %v205, 8.507059e+37
    %v207 = vand.u32 %v180, 2147483648
    %v208 = vor.u32 1.1754944e-38, %v207
    %v209 = vsel %vm206, %v208, %v204
    %v210 = vmul.f32 %v174, %v209
    %211 = vrot.lane.b32.xlu0 %v103, 64
    %v212 = vpop.permute.xlu0 %211
    %v215 = vsel %vm111, %v195, 0
    %217 = vmatpush.msra.mxu0 0.0
    %218 = vmatpush.msra.mxu0 0.0
    %219 = vmatpush.msra.mxu0 0.0
    %220 = vmatpush.msra.mxu0 0.0
    %221 = vmatpush.msra.mxu0 0.0
    %222 = vmatpush.msra.mxu0 0.0
    %223 = vmatpush.msra.mxu0 0.0
    %224 = vmatpush.msra.mxu0 0.0
    %225 = vmatpush.msra.mxu0 0.0
    %226 = vmatpush.msra.mxu0 0.0
    %227 = vmatpush.msra.mxu0 0.0
    %228 = vmatpush.msra.mxu0 0.0
    %229 = vmatpush.msra.mxu0 0.0
    %230 = vmatpush.msra.mxu0 0.0
    %231 = vmatpush.msra.mxu0 0.0
    %232 = vmatpush.msra.mxu0 %v212
    %233 = vmatmul.f32.gmra.mxu0 %v215
    %v234 = vpop.f32.mrf.mxu0
    %v235 = vadd.f32 0.0, %v234
    %236 = vdwg.mxu0
    %237 = vrot.lane.b32.xlu0 %v106, 64
    %v238 = vpop.permute.xlu0 %237
    %v241 = vsel %vm111, %v210, 0
    %243 = vmatpush.msra.mxu0 0.0
    %244 = vmatpush.msra.mxu0 0.0
    %245 = vmatpush.msra.mxu0 0.0
    %246 = vmatpush.msra.mxu0 0.0
    %247 = vmatpush.msra.mxu0 0.0
    %248 = vmatpush.msra.mxu0 0.0
    %249 = vmatpush.msra.mxu0 0.0
    %250 = vmatpush.msra.mxu0 0.0
    %251 = vmatpush.msra.mxu0 0.0
    %252 = vmatpush.msra.mxu0 0.0
    %253 = vmatpush.msra.mxu0 0.0
    %254 = vmatpush.msra.mxu0 0.0
    %255 = vmatpush.msra.mxu0 0.0
    %256 = vmatpush.msra.mxu0 0.0
    %257 = vmatpush.msra.mxu0 0.0
    %258 = vmatpush.msra.mxu0 %v238
    %259 = vmatmul.f32.gmra.mxu0 %v241
    %v260 = vpop.f32.mrf.mxu0
    %v261 = vadd.f32 0.0, %v260
    %262 = vdwg.mxu0
    %263 = vrot.lane.b32.xlu0 %v103, 120
    %v264 = vpop.permute.xlu0 %263
    %265 = vrot.lane.b32.xlu0 %v103, 88
    %v266 = vpop.permute.xlu0 %265
    %v267 = vsel %vm111, %v264, 0
    %v269 = vsel %vm111, %v266, 0
    %271 = vmatpush.xpose.msra.mxu0 0.0
    %272 = vmatpush.xpose.msra.mxu0 0.0
    %273 = vmatpush.xpose.msra.mxu0 0.0
    %274 = vmatpush.xpose.msra.mxu0 0.0
    %275 = vmatpush.xpose.msra.mxu0 0.0
    %276 = vmatpush.xpose.msra.mxu0 0.0
    %277 = vmatpush.xpose.msra.mxu0 0.0
    %278 = vmatpush.xpose.msra.mxu0 0.0
    %279 = vmatpush.xpose.msra.mxu0 0.0
    %280 = vmatpush.xpose.msra.mxu0 0.0
    %281 = vmatpush.xpose.msra.mxu0 0.0
    %282 = vmatpush.xpose.msra.mxu0 0.0
    %283 = vmatpush.xpose.msra.mxu0 0.0
    %284 = vmatpush.xpose.msra.mxu0 0.0
    %285 = vmatpush.xpose.msra.mxu0 0.0
    %286 = vmatpush.xpose.msra.mxu0 %v269
    %287 = vmatmul.f32.gmra.mxu0 %v267
    %v288 = vpop.f32.mrf.mxu0
    %v289 = vadd.f32 0.0, %v288
    %290 = vdwg.mxu0
    %291 = vrot.lane.b32.xlu0 %v106, 120
    %v292 = vpop.permute.xlu0 %291
    %293 = vrot.lane.b32.xlu0 %v106, 88
    %v294 = vpop.permute.xlu0 %293
    %v295 = vsel %vm111, %v292, 0
    %v297 = vsel %vm111, %v294, 0
    %299 = vmatpush.xpose.msra.mxu0 0.0
    %300 = vmatpush.xpose.msra.mxu0 0.0
    %301 = vmatpush.xpose.msra.mxu0 0.0
    %302 = vmatpush.xpose.msra.mxu0 0.0
    %303 = vmatpush.xpose.msra.mxu0 0.0
    %304 = vmatpush.xpose.msra.mxu0 0.0
    %305 = vmatpush.xpose.msra.mxu0 0.0
    %306 = vmatpush.xpose.msra.mxu0 0.0
    %307 = vmatpush.xpose.msra.mxu0 0.0
    %308 = vmatpush.xpose.msra.mxu0 0.0
    %309 = vmatpush.xpose.msra.mxu0 0.0
    %310 = vmatpush.xpose.msra.mxu0 0.0
    %311 = vmatpush.xpose.msra.mxu0 0.0
    %312 = vmatpush.xpose.msra.mxu0 0.0
    %313 = vmatpush.xpose.msra.mxu0 0.0
    %314 = vmatpush.xpose.msra.mxu0 %v297
    %315 = vmatmul.f32.gmra.mxu0 %v295
    %v316 = vpop.f32.mrf.mxu0
    %v317 = vadd.f32 0.0, %v316
    %318 = vdwg.mxu0
    %v319 = vsel %vm111, %v289, -inf
    %320 = vmax.xlane.f32.xlu0 %v319
    %v321 = vpop.xlane.xlu0 %320
    %v322 = vsel %vm111, %v317, -inf
    %323 = vmax.xlane.f32.xlu0 %v322
    %v324 = vpop.xlane.xlu0 %323
    %v325 = vsub.f32 %v289, %v321
    %v326 = vsub.f32 %v317, %v324
    %v327 = vmul.f32 %v325, 1.442695
    %v328 = vpow.pop %v327
    %v329 = vmul.f32 %v326, 1.442695
    %v330 = vpow.pop %v329
    %v331 = vsel %vm111, %v328, 0.0
    %332 = vadd.xlane.f32.xlu0 %v331
    %v333 = vpop.xlane.xlu0 %332
    %v334 = vsel %vm111, %v330, 0.0
    %335 = vadd.xlane.f32.xlu0 %v334
    %v336 = vpop.xlane.xlu0 %335
    %v337 = vrcp.pop %v333
    %v338 = vmul.f32 %v333, %v337
    %v339 = vsub.f32 1.0, %v338
    %v340 = vmul.f32 %v337, %v339
    %v341 = vadd.f32 %v337, %v340
    %vm342 = vweird.f32 %v333
    %vm343 = vweird.f32 %v337
    %vm344 = vmor %vm342, %vm343
    %v345 = vsel %vm344, %v337, %v341
    %v346 = vand.u32 2147483647, %v333
    %vm347 = vcmp.eq.f32.partialorder %v346, 8.507059e+37
    %v348 = vand.u32 %v333, 2147483648
    %v349 = vor.u32 1.1754944e-38, %v348
    %v350 = vsel %vm347, %v349, %v345
    %v351 = vmul.f32 %v328, %v350
    %v352 = vrcp.pop %v336
    %v353 = vmul.f32 %v336, %v352
    %v354 = vsub.f32 1.0, %v353
    %v355 = vmul.f32 %v352, %v354
    %v356 = vadd.f32 %v352, %v355
    %vm357 = vweird.f32 %v336
    %vm358 = vweird.f32 %v352
    %vm359 = vmor %vm357, %vm358
    %v360 = vsel %vm359, %v352, %v356
    %v361 = vand.u32 2147483647, %v336
    %vm362 = vcmp.eq.f32.partialorder %v361, 8.507059e+37
    %v363 = vand.u32 %v336, 2147483648
    %v364 = vor.u32 1.1754944e-38, %v363
    %v365 = vsel %vm362, %v364, %v360
    %v366 = vmul.f32 %v330, %v365
    %367 = vrot.lane.b32.xlu0 %v103, 56
    %v368 = vpop.permute.xlu0 %367
    %v371 = vsel %vm111, %v351, 0
    %373 = vmatpush.msra.mxu0 0.0
    %374 = vmatpush.msra.mxu0 0.0
    %375 = vmatpush.msra.mxu0 0.0
    %376 = vmatpush.msra.mxu0 0.0
    %377 = vmatpush.msra.mxu0 0.0
    %378 = vmatpush.msra.mxu0 0.0
    %379 = vmatpush.msra.mxu0 0.0
    %380 = vmatpush.msra.mxu0 0.0
    %381 = vmatpush.msra.mxu0 0.0
    %382 = vmatpush.msra.mxu0 0.0
    %383 = vmatpush.msra.mxu0 0.0
    %384 = vmatpush.msra.mxu0 0.0
    %385 = vmatpush.msra.mxu0 0.0
    %386 = vmatpush.msra.mxu0 0.0
    %387 = vmatpush.msra.mxu0 0.0
    %388 = vmatpush.msra.mxu0 %v368
    %389 = vmatmul.f32.gmra.mxu0 %v371
    %v390 = vpop.f32.mrf.mxu0
    %v391 = vadd.f32 0.0, %v390
    %392 = vdwg.mxu0
    %393 = vrot.lane.b32.xlu0 %v106, 56
    %v394 = vpop.permute.xlu0 %393
    %v397 = vsel %vm111, %v366, 0
    %399 = vmatpush.msra.mxu0 0.0
    %400 = vmatpush.msra.mxu0 0.0
    %401 = vmatpush.msra.mxu0 0.0
    %402 = vmatpush.msra.mxu0 0.0
    %403 = vmatpush.msra.mxu0 0.0
    %404 = vmatpush.msra.mxu0 0.0
    %405 = vmatpush.msra.mxu0 0.0
    %406 = vmatpush.msra.mxu0 0.0
    %407 = vmatpush.msra.mxu0 0.0
    %408 = vmatpush.msra.mxu0 0.0
    %409 = vmatpush.msra.mxu0 0.0
    %410 = vmatpush.msra.mxu0 0.0
    %411 = vmatpush.msra.mxu0 0.0
    %412 = vmatpush.msra.mxu0 0.0
    %413 = vmatpush.msra.mxu0 0.0
    %414 = vmatpush.msra.mxu0 %v394
    %415 = vmatmul.f32.gmra.mxu0 %v397
    %v416 = vpop.f32.mrf.mxu0
    %v417 = vadd.f32 0.0, %v416
    %418 = vdwg.mxu0
    %v420 = vsel %vm111, %v391, 0
    %v423 = vsel %vm111, %v417, 0
    %425 = vmatpush.msra.mxu0 0.0
    %426 = vmatpush.msra.mxu0 0.0
    %427 = vmatpush.msra.mxu0 0.0
    %428 = vmatpush.msra.mxu0 0.0
    %429 = vmatpush.msra.mxu0 0.0
    %430 = vmatpush.msra.mxu0 0.0
    %431 = vmatpush.msra.mxu0 0.0
    %432 = vmatpush.msra.mxu0 0.0
    %433 = vmatpush.msra.mxu0 0.0
    %434 = vmatpush.msra.mxu0 0.0
    %435 = vmatpush.msra.mxu0 0.0
    %436 = vmatpush.msra.mxu0 0.0
    %437 = vmatpush.msra.mxu0 0.0
    %438 = vmatpush.msra.mxu0 0.0
    %439 = vmatpush.msra.mxu0 0.0
    %440 = vmatpush.msra.mxu0 %v61
    %441 = vmatmul.f32.gmra.mxu0 %v420
    %v442 = vpop.f32.mrf.mxu0
    %v443 = vadd.f32 0.0, %v442
    %444 = vmatmul.f32.gmra.mxu0 %v423
    %v445 = vpop.f32.mrf.mxu0
    %v446 = vadd.f32 0.0, %v445
    %447 = vdwg.mxu0
    %v449 = vsel %vm111, %v235, 0
    %v452 = vsel %vm111, %v261, 0
    %454 = vmatpush.msra.mxu0 0.0
    %455 = vmatpush.msra.mxu0 0.0
    %456 = vmatpush.msra.mxu0 0.0
    %457 = vmatpush.msra.mxu0 0.0
    %458 = vmatpush.msra.mxu0 0.0
    %459 = vmatpush.msra.mxu0 0.0
    %460 = vmatpush.msra.mxu0 0.0
    %461 = vmatpush.msra.mxu0 0.0
    %462 = vmatpush.msra.mxu0 0.0
    %463 = vmatpush.msra.mxu0 0.0
    %464 = vmatpush.msra.mxu0 0.0
    %465 = vmatpush.msra.mxu0 0.0
    %466 = vmatpush.msra.mxu0 0.0
    %467 = vmatpush.msra.mxu0 0.0
    %468 = vmatpush.msra.mxu0 0.0
    %469 = vmatpush.msra.mxu0 %v60
    %470 = vmatmul.f32.gmra.mxu0 %v449
    %v471 = vpop.f32.mrf.mxu0
    %v472 = vadd.f32 %v443, %v471
    %473 = vmatmul.f32.gmra.mxu0 %v452
    %v474 = vpop.f32.mrf.mxu0
    %v475 = vadd.f32 %v446, %v474
    %476 = vdwg.mxu0
    %477 = vrot.lane.b32.xlu0 %v103, 112
    %v478 = vpop.permute.xlu0 %477
    %479 = vrot.lane.b32.xlu0 %v103, 80
    %v480 = vpop.permute.xlu0 %479
    %v481 = vsel %vm111, %v478, 0
    %v483 = vsel %vm111, %v480, 0
    %485 = vmatpush.xpose.msra.mxu0 0.0
    %486 = vmatpush.xpose.msra.mxu0 0.0
    %487 = vmatpush.xpose.msra.mxu0 0.0
    %488 = vmatpush.xpose.msra.mxu0 0.0
    %489 = vmatpush.xpose.msra.mxu0 0.0
    %490 = vmatpush.xpose.msra.mxu0 0.0
    %491 = vmatpush.xpose.msra.mxu0 0.0
    %492 = vmatpush.xpose.msra.mxu0 0.0
    %493 = vmatpush.xpose.msra.mxu0 0.0
    %494 = vmatpush.xpose.msra.mxu0 0.0
    %495 = vmatpush.xpose.msra.mxu0 0.0
    %496 = vmatpush.xpose.msra.mxu0 0.0
    %497 = vmatpush.xpose.msra.mxu0 0.0
    %498 = vmatpush.xpose.msra.mxu0 0.0
    %499 = vmatpush.xpose.msra.mxu0 0.0
    %500 = vmatpush.xpose.msra.mxu0 %v483
    %501 = vmatmul.f32.gmra.mxu0 %v481
    %v502 = vpop.f32.mrf.mxu0
    %v503 = vadd.f32 0.0, %v502
    %504 = vdwg.mxu0
    %505 = vrot.lane.b32.xlu0 %v106, 112
    %v506 = vpop.permute.xlu0 %505
    %507 = vrot.lane.b32.xlu0 %v106, 80
    %v508 = vpop.permute.xlu0 %507
    %v509 = vsel %vm111, %v506, 0
    %v511 = vsel %vm111, %v508, 0
    %513 = vmatpush.xpose.msra.mxu0 0.0
    %514 = vmatpush.xpose.msra.mxu0 0.0
    %515 = vmatpush.xpose.msra.mxu0 0.0
    %516 = vmatpush.xpose.msra.mxu0 0.0
    %517 = vmatpush.xpose.msra.mxu0 0.0
    %518 = vmatpush.xpose.msra.mxu0 0.0
    %519 = vmatpush.xpose.msra.mxu0 0.0
    %520 = vmatpush.xpose.msra.mxu0 0.0
    %521 = vmatpush.xpose.msra.mxu0 0.0
    %522 = vmatpush.xpose.msra.mxu0 0.0
    %523 = vmatpush.xpose.msra.mxu0 0.0
    %524 = vmatpush.xpose.msra.mxu0 0.0
    %525 = vmatpush.xpose.msra.mxu0 0.0
    %526 = vmatpush.xpose.msra.mxu0 0.0
    %527 = vmatpush.xpose.msra.mxu0 0.0
    %528 = vmatpush.xpose.msra.mxu0 %v511
    %529 = vmatmul.f32.gmra.mxu0 %v509
    %v530 = vpop.f32.mrf.mxu0
    %v531 = vadd.f32 0.0, %v530
    %532 = vdwg.mxu0
    %v533 = vsel %vm111, %v503, -inf
    %534 = vmax.xlane.f32.xlu0 %v533
    %v535 = vpop.xlane.xlu0 %534
    %v536 = vsel %vm111, %v531, -inf
    %537 = vmax.xlane.f32.xlu0 %v536
    %v538 = vpop.xlane.xlu0 %537
    %v539 = vsub.f32 %v503, %v535
    %v540 = vsub.f32 %v531, %v538
    %v541 = vmul.f32 %v539, 1.442695
    %v542 = vpow.pop %v541
    %v543 = vmul.f32 %v540, 1.442695
    %v544 = vpow.pop %v543
    %v545 = vsel %vm111, %v542, 0.0
    %546 = vadd.xlane.f32.xlu0 %v545
    %v547 = vpop.xlane.xlu0 %546
    %v548 = vsel %vm111, %v544, 0.0
    %549 = vadd.xlane.f32.xlu0 %v548
    %v550 = vpop.xlane.xlu0 %549
    %v551 = vrcp.pop %v547
    %v552 = vmul.f32 %v547, %v551
    %v553 = vsub.f32 1.0, %v552
    %v554 = vmul.f32 %v551, %v553
    %v555 = vadd.f32 %v551, %v554
    %vm556 = vweird.f32 %v547
    %vm557 = vweird.f32 %v551
    %vm558 = vmor %vm556, %vm557
    %v559 = vsel %vm558, %v551, %v555
    %v560 = vand.u32 2147483647, %v547
    %vm561 = vcmp.eq.f32.partialorder %v560, 8.507059e+37
    %v562 = vand.u32 %v547, 2147483648
    %v563 = vor.u32 1.1754944e-38, %v562
    %v564 = vsel %vm561, %v563, %v559
    %v565 = vmul.f32 %v542, %v564
    %v566 = vrcp.pop %v550
    %v567 = vmul.f32 %v550, %v566
    %v568 = vsub.f32 1.0, %v567
    %v569 = vmul.f32 %v566, %v568
    %v570 = vadd.f32 %v566, %v569
    %vm571 = vweird.f32 %v550
    %vm572 = vweird.f32 %v566
    %vm573 = vmor %vm571, %vm572
    %v574 = vsel %vm573, %v566, %v570
    %v575 = vand.u32 2147483647, %v550
    %vm576 = vcmp.eq.f32.partialorder %v575, 8.507059e+37
    %v577 = vand.u32 %v550, 2147483648
    %v578 = vor.u32 1.1754944e-38, %v577
    %v579 = vsel %vm576, %v578, %v574
    %v580 = vmul.f32 %v544, %v579
    %581 = vrot.lane.b32.xlu0 %v103, 48
    %v582 = vpop.permute.xlu0 %581
    %v585 = vsel %vm111, %v565, 0
    %587 = vmatpush.msra.mxu0 0.0
    %588 = vmatpush.msra.mxu0 0.0
    %589 = vmatpush.msra.mxu0 0.0
    %590 = vmatpush.msra.mxu0 0.0
    %591 = vmatpush.msra.mxu0 0.0
    %592 = vmatpush.msra.mxu0 0.0
    %593 = vmatpush.msra.mxu0 0.0
    %594 = vmatpush.msra.mxu0 0.0
    %595 = vmatpush.msra.mxu0 0.0
    %596 = vmatpush.msra.mxu0 0.0
    %597 = vmatpush.msra.mxu0 0.0
    %598 = vmatpush.msra.mxu0 0.0
    %599 = vmatpush.msra.mxu0 0.0
    %600 = vmatpush.msra.mxu0 0.0
    %601 = vmatpush.msra.mxu0 0.0
    %602 = vmatpush.msra.mxu0 %v582
    %603 = vmatmul.f32.gmra.mxu0 %v585
    %v604 = vpop.f32.mrf.mxu0
    %v605 = vadd.f32 0.0, %v604
    %606 = vdwg.mxu0
    %607 = vrot.lane.b32.xlu0 %v106, 48
    %v608 = vpop.permute.xlu0 %607
    %v611 = vsel %vm111, %v580, 0
    %613 = vmatpush.msra.mxu0 0.0
    %614 = vmatpush.msra.mxu0 0.0
    %615 = vmatpush.msra.mxu0 0.0
    %616 = vmatpush.msra.mxu0 0.0
    %617 = vmatpush.msra.mxu0 0.0
    %618 = vmatpush.msra.mxu0 0.0
    %619 = vmatpush.msra.mxu0 0.0
    %620 = vmatpush.msra.mxu0 0.0
    %621 = vmatpush.msra.mxu0 0.0
    %622 = vmatpush.msra.mxu0 0.0
    %623 = vmatpush.msra.mxu0 0.0
    %624 = vmatpush.msra.mxu0 0.0
    %625 = vmatpush.msra.mxu0 0.0
    %626 = vmatpush.msra.mxu0 0.0
    %627 = vmatpush.msra.mxu0 0.0
    %628 = vmatpush.msra.mxu0 %v608
    %629 = vmatmul.f32.gmra.mxu0 %v611
    %v630 = vpop.f32.mrf.mxu0
    %v631 = vadd.f32 0.0, %v630
    %632 = vdwg.mxu0
    %v634 = vsel %vm111, %v605, 0
    %v637 = vsel %vm111, %v631, 0
    %639 = vmatpush.msra.mxu0 0.0
    %640 = vmatpush.msra.mxu0 0.0
    %641 = vmatpush.msra.mxu0 0.0
    %642 = vmatpush.msra.mxu0 0.0
    %643 = vmatpush.msra.mxu0 0.0
    %644 = vmatpush.msra.mxu0 0.0
    %645 = vmatpush.msra.mxu0 0.0
    %646 = vmatpush.msra.mxu0 0.0
    %647 = vmatpush.msra.mxu0 0.0
    %648 = vmatpush.msra.mxu0 0.0
    %649 = vmatpush.msra.mxu0 0.0
    %650 = vmatpush.msra.mxu0 0.0
    %651 = vmatpush.msra.mxu0 0.0
    %652 = vmatpush.msra.mxu0 0.0
    %653 = vmatpush.msra.mxu0 0.0
    %654 = vmatpush.msra.mxu0 %v62
    %655 = vmatmul.f32.gmra.mxu0 %v634
    %v656 = vpop.f32.mrf.mxu0
    %v657 = vadd.f32 0.0, %v656
    %658 = vmatmul.f32.gmra.mxu0 %v637
    %v659 = vpop.f32.mrf.mxu0
    %v660 = vadd.f32 0.0, %v659
    %661 = vdwg.mxu0
    %v662 = vadd.f32 %v472, %v657
    %v663 = vadd.f32 %v475, %v660
    %664 = vrot.lane.b32.xlu0 %v103, 104
    %v665 = vpop.permute.xlu0 %664
    %666 = vrot.lane.b32.xlu0 %v103, 72
    %v667 = vpop.permute.xlu0 %666
    %v668 = vsel %vm111, %v665, 0
    %v670 = vsel %vm111, %v667, 0
    %672 = vmatpush.xpose.msra.mxu0 0.0
    %673 = vmatpush.xpose.msra.mxu0 0.0
    %674 = vmatpush.xpose.msra.mxu0 0.0
    %675 = vmatpush.xpose.msra.mxu0 0.0
    %676 = vmatpush.xpose.msra.mxu0 0.0
    %677 = vmatpush.xpose.msra.mxu0 0.0
    %678 = vmatpush.xpose.msra.mxu0 0.0
    %679 = vmatpush.xpose.msra.mxu0 0.0
    %680 = vmatpush.xpose.msra.mxu0 0.0
    %681 = vmatpush.xpose.msra.mxu0 0.0
    %682 = vmatpush.xpose.msra.mxu0 0.0
    %683 = vmatpush.xpose.msra.mxu0 0.0
    %684 = vmatpush.xpose.msra.mxu0 0.0
    %685 = vmatpush.xpose.msra.mxu0 0.0
    %686 = vmatpush.xpose.msra.mxu0 0.0
    %687 = vmatpush.xpose.msra.mxu0 %v670
    %688 = vmatmul.f32.gmra.mxu0 %v668
    %v689 = vpop.f32.mrf.mxu0
    %v690 = vadd.f32 0.0, %v689
    %691 = vdwg.mxu0
    %692 = vrot.lane.b32.xlu0 %v106, 104
    %v693 = vpop.permute.xlu0 %692
    %694 = vrot.lane.b32.xlu0 %v106, 72
    %v695 = vpop.permute.xlu0 %694
    %v696 = vsel %vm111, %v693, 0
    %v698 = vsel %vm111, %v695, 0
    %700 = vmatpush.xpose.msra.mxu0 0.0
    %701 = vmatpush.xpose.msra.mxu0 0.0
    %702 = vmatpush.xpose.msra.mxu0 0.0
    %703 = vmatpush.xpose.msra.mxu0 0.0
    %704 = vmatpush.xpose.msra.mxu0 0.0
    %705 = vmatpush.xpose.msra.mxu0 0.0
    %706 = vmatpush.xpose.msra.mxu0 0.0
    %707 = vmatpush.xpose.msra.mxu0 0.0
    %708 = vmatpush.xpose.msra.mxu0 0.0
    %709 = vmatpush.xpose.msra.mxu0 0.0
    %710 = vmatpush.xpose.msra.mxu0 0.0
    %711 = vmatpush.xpose.msra.mxu0 0.0
    %712 = vmatpush.xpose.msra.mxu0 0.0
    %713 = vmatpush.xpose.msra.mxu0 0.0
    %714 = vmatpush.xpose.msra.mxu0 0.0
    %715 = vmatpush.xpose.msra.mxu0 %v698
    %716 = vmatmul.f32.gmra.mxu0 %v696
    %v717 = vpop.f32.mrf.mxu0
    %v718 = vadd.f32 0.0, %v717
    %719 = vdwg.mxu0
    %v720 = vsel %vm111, %v690, -inf
    %721 = vmax.xlane.f32.xlu0 %v720
    %v722 = vpop.xlane.xlu0 %721
    %v723 = vsel %vm111, %v718, -inf
    %724 = vmax.xlane.f32.xlu0 %v723
    %v725 = vpop.xlane.xlu0 %724
    %v726 = vsub.f32 %v690, %v722
    %v727 = vsub.f32 %v718, %v725
    %v728 = vmul.f32 %v726, 1.442695
    %v729 = vpow.pop %v728
    %v730 = vmul.f32 %v727, 1.442695
    %v731 = vpow.pop %v730
    %v732 = vsel %vm111, %v729, 0.0
    %733 = vadd.xlane.f32.xlu0 %v732
    %v734 = vpop.xlane.xlu0 %733
    %v735 = vsel %vm111, %v731, 0.0
    %736 = vadd.xlane.f32.xlu0 %v735
    %v737 = vpop.xlane.xlu0 %736
    %v738 = vrcp.pop %v734
    %v739 = vmul.f32 %v734, %v738
    %v740 = vsub.f32 1.0, %v739
    %v741 = vmul.f32 %v738, %v740
    %v742 = vadd.f32 %v738, %v741
    %vm743 = vweird.f32 %v734
    %vm744 = vweird.f32 %v738
    %vm745 = vmor %vm743, %vm744
    %v746 = vsel %vm745, %v738, %v742
    %v747 = vand.u32 2147483647, %v734
    %vm748 = vcmp.eq.f32.partialorder %v747, 8.507059e+37
    %v749 = vand.u32 %v734, 2147483648
    %v750 = vor.u32 1.1754944e-38, %v749
    %v751 = vsel %vm748, %v750, %v746
    %v752 = vmul.f32 %v729, %v751
    %v753 = vrcp.pop %v737
    %v754 = vmul.f32 %v737, %v753
    %v755 = vsub.f32 1.0, %v754
    %v756 = vmul.f32 %v753, %v755
    %v757 = vadd.f32 %v753, %v756
    %vm758 = vweird.f32 %v737
    %vm759 = vweird.f32 %v753
    %vm760 = vmor %vm758, %vm759
    %v761 = vsel %vm760, %v753, %v757
    %v762 = vand.u32 2147483647, %v737
    %vm763 = vcmp.eq.f32.partialorder %v762, 8.507059e+37
    %v764 = vand.u32 %v737, 2147483648
    %v765 = vor.u32 1.1754944e-38, %v764
    %v766 = vsel %vm763, %v765, %v761
    %v767 = vmul.f32 %v731, %v766
    %768 = vrot.lane.b32.xlu0 %v103, 40
    %v769 = vpop.permute.xlu0 %768
    %v772 = vsel %vm111, %v752, 0
    %774 = vmatpush.msra.mxu0 0.0
    %775 = vmatpush.msra.mxu0 0.0
    %776 = vmatpush.msra.mxu0 0.0
    %777 = vmatpush.msra.mxu0 0.0
    %778 = vmatpush.msra.mxu0 0.0
    %779 = vmatpush.msra.mxu0 0.0
    %780 = vmatpush.msra.mxu0 0.0
    %781 = vmatpush.msra.mxu0 0.0
    %782 = vmatpush.msra.mxu0 0.0
    %783 = vmatpush.msra.mxu0 0.0
    %784 = vmatpush.msra.mxu0 0.0
    %785 = vmatpush.msra.mxu0 0.0
    %786 = vmatpush.msra.mxu0 0.0
    %787 = vmatpush.msra.mxu0 0.0
    %788 = vmatpush.msra.mxu0 0.0
    %789 = vmatpush.msra.mxu0 %v769
    %790 = vmatmul.f32.gmra.mxu0 %v772
    %v791 = vpop.f32.mrf.mxu0
    %v792 = vadd.f32 0.0, %v791
    %793 = vdwg.mxu0
    %794 = vrot.lane.b32.xlu0 %v106, 40
    %v795 = vpop.permute.xlu0 %794
    %v798 = vsel %vm111, %v767, 0
    %800 = vmatpush.msra.mxu0 0.0
    %801 = vmatpush.msra.mxu0 0.0
    %802 = vmatpush.msra.mxu0 0.0
    %803 = vmatpush.msra.mxu0 0.0
    %804 = vmatpush.msra.mxu0 0.0
    %805 = vmatpush.msra.mxu0 0.0
    %806 = vmatpush.msra.mxu0 0.0
    %807 = vmatpush.msra.mxu0 0.0
    %808 = vmatpush.msra.mxu0 0.0
    %809 = vmatpush.msra.mxu0 0.0
    %810 = vmatpush.msra.mxu0 0.0
    %811 = vmatpush.msra.mxu0 0.0
    %812 = vmatpush.msra.mxu0 0.0
    %813 = vmatpush.msra.mxu0 0.0
    %814 = vmatpush.msra.mxu0 0.0
    %815 = vmatpush.msra.mxu0 %v795
    %816 = vmatmul.f32.gmra.mxu0 %v798
    %v817 = vpop.f32.mrf.mxu0
    %v818 = vadd.f32 0.0, %v817
    %819 = vdwg.mxu0
    %v821 = vsel %vm111, %v792, 0
    %v824 = vsel %vm111, %v818, 0
    %826 = vmatpush.msra.mxu0 0.0
    %827 = vmatpush.msra.mxu0 0.0
    %828 = vmatpush.msra.mxu0 0.0
    %829 = vmatpush.msra.mxu0 0.0
    %830 = vmatpush.msra.mxu0 0.0
    %831 = vmatpush.msra.mxu0 0.0
    %832 = vmatpush.msra.mxu0 0.0
    %833 = vmatpush.msra.mxu0 0.0
    %834 = vmatpush.msra.mxu0 0.0
    %835 = vmatpush.msra.mxu0 0.0
    %836 = vmatpush.msra.mxu0 0.0
    %837 = vmatpush.msra.mxu0 0.0
    %838 = vmatpush.msra.mxu0 0.0
    %839 = vmatpush.msra.mxu0 0.0
    %840 = vmatpush.msra.mxu0 0.0
    %841 = vmatpush.msra.mxu0 %v63
    %842 = vmatmul.f32.gmra.mxu0 %v821
    %v843 = vpop.f32.mrf.mxu0
    %v844 = vadd.f32 0.0, %v843
    %845 = vmatmul.f32.gmra.mxu0 %v824
    %v846 = vpop.f32.mrf.mxu0
    %v847 = vadd.f32 0.0, %v846
    %848 = vdwg.mxu0
    %v849 = vadd.f32 %v662, %v844
    %v850 = vadd.f32 %v663, %v847
    %v851 = vperm.slane %v76, 1
    %v852 = vadd.f32 %v849, %v851
    %v853 = vadd.f32 %v850, %v851
    %v854 = vadd.f32 %v54, %v852
    %v855 = vadd.f32 %v55, %v853
    %v856 = vsel %vm78, %v854, 0.0
    %857 = vadd.xlane.f32.xlu0 %v856
    %v858 = vpop.xlane.xlu0 %857
    %v859 = vsel %vm78, %v855, 0.0
    %860 = vadd.xlane.f32.xlu0 %v859
    %v861 = vpop.xlane.xlu0 %860
    %v862 = vrcp.pop 32.0
    %v863 = vmul.f32 32.0, %v862
    %v864 = vsub.f32 1.0, %v863
    %v865 = vmul.f32 %v862, %v864
    %v866 = vadd.f32 %v862, %v865
    %vm867 = vweird.f32 %v862
    %v868 = vsel %vm867, %v862, %v866
    %v869 = vmul.f32 %v858, %v868
    %v870 = vmul.f32 %v861, %v868
    %v871 = vmul.f32 %v854, %v854
    %v872 = vmul.f32 %v855, %v855
    %v873 = vsel %vm78, %v871, 0.0
    %874 = vadd.xlane.f32.xlu0 %v873
    %v875 = vpop.xlane.xlu0 %874
    %v876 = vsel %vm78, %v872, 0.0
    %877 = vadd.xlane.f32.xlu0 %v876
    %v878 = vpop.xlane.xlu0 %877
    %v879 = vmul.f32 %v875, %v868
    %v880 = vmul.f32 %v878, %v868
    %v881 = vmul.f32 %v869, %v869
    %v882 = vmul.f32 %v870, %v870
    %v883 = vsub.f32 %v879, %v881
    %v884 = vsub.f32 %v880, %v882
    %v885 = vsub.f32 %v854, %v869
    %v886 = vsub.f32 %v855, %v870
    %v887 = vadd.f32 %v883, 1e-05
    %v888 = vadd.f32 %v884, 1e-05
    %v889 = vrsqrt.pop %v887
    %v890 = vmul.f32 %v889, %v887
    %v891 = vmul.f32 %v890, %v889
    %v892 = vmul.f32 0.5, %v891
    %v893 = vsub.f32 1.5, %v892
    %v894 = vmul.f32 %v889, %v893
    %vm895 = vweird.f32 %v887
    %vm896 = vweird.f32 %v889
    %vm897 = vmor %vm895, %vm896
    %v898 = vsel %vm897, %v889, %v894
    %v899 = vrsqrt.pop %v888
    %v900 = vmul.f32 %v899, %v888
    %v901 = vmul.f32 %v900, %v899
    %v902 = vmul.f32 0.5, %v901
    %v903 = vsub.f32 1.5, %v902
    %v904 = vmul.f32 %v899, %v903
    %vm905 = vweird.f32 %v888
    %vm906 = vweird.f32 %v899
    %vm907 = vmor %vm905, %vm906
    %v908 = vsel %vm907, %v899, %v904
    %v909 = vmul.f32 %v885, %v898
    %v910 = vmul.f32 %v886, %v908
    %v911 = vperm.slane %v76, 2
    %v912 = vmul.f32 %v909, %v911
    %v913 = vmul.f32 %v910, %v911
    %v914 = vperm.slane %v76, 3
    %v915 = vadd.f32 %v912, %v914
    %v916 = vadd.f32 %v913, %v914
    %v917 = vperm.slane %v76, 4
    %v919 = vsel %vm78, %v915, 0
    %v922 = vsel %vm78, %v916, 0
    %924 = vmatpush.msra.mxu0 0.0
    %925 = vmatpush.msra.mxu0 0.0
    %926 = vmatpush.msra.mxu0 0.0
    %927 = vmatpush.msra.mxu0 0.0
    %928 = vmatpush.msra.mxu0 0.0
    %929 = vmatpush.msra.mxu0 0.0
    %930 = vmatpush.msra.mxu0 0.0
    %931 = vmatpush.msra.mxu0 0.0
    %932 = vmatpush.msra.mxu0 0.0
    %933 = vmatpush.msra.mxu0 0.0
    %934 = vmatpush.msra.mxu0 0.0
    %935 = vmatpush.msra.mxu0 0.0
    %936 = vmatpush.msra.mxu0 %v67
    %937 = vmatpush.msra.mxu0 %v66
    %938 = vmatpush.msra.mxu0 %v65
    %939 = vmatpush.msra.mxu0 %v64
    %940 = vmatmul.f32.gmra.mxu0 %v919
    %v941 = vpop.f32.mrf.mxu0
    %v942 = vadd.f32 %v917, %v941
    %943 = vmatmul.f32.gmra.mxu0 %v922
    %v944 = vpop.f32.mrf.mxu0
    %v945 = vadd.f32 %v917, %v944
    %946 = vdwg.mxu0
    %v947 = vmax.f32 %v942, 0.0
    %v948 = vmax.f32 %v945, 0.0
    %v949 = vperm.slane %v76, 5
    %vm950 = vcmask 523264
    %v952 = vsel %vm950, %v947, 0
    %v955 = vsel %vm950, %v948, 0
    %957 = vmatpush.msra.mxu0 0.0
    %958 = vmatpush.msra.mxu0 0.0
    %959 = vmatpush.msra.mxu0 0.0
    %960 = vmatpush.msra.mxu0 0.0
    %961 = vmatpush.msra.mxu0 0.0
    %962 = vmatpush.msra.mxu0 0.0
    %963 = vmatpush.msra.mxu0 0.0
    %964 = vmatpush.msra.mxu0 0.0
    %965 = vmatpush.msra.mxu0 %v75
    %966 = vmatpush.msra.mxu0 %v74
    %967 = vmatpush.msra.mxu0 %v73
    %968 = vmatpush.msra.mxu0 %v72
    %969 = vmatpush.msra.mxu0 %v71
    %970 = vmatpush.msra.mxu0 %v70
    %971 = vmatpush.msra.mxu0 %v69
    %972 = vmatpush.msra.mxu0 %v68
    %973 = vmatmul.f32.gmra.mxu0 %v952
    %v974 = vpop.f32.mrf.mxu0
    %v975 = vadd.f32 %v949, %v974
    %976 = vmatmul.f32.gmra.mxu0 %v955
    %v977 = vpop.f32.mrf.mxu0
    %v978 = vadd.f32 %v949, %v977
    %979 = vdwg.mxu0
    %v980 = vadd.f32 %v915, %v975
    %v981 = vadd.f32 %v916, %v978
    %v982 = vsel %vm78, %v980, 0.0
    %983 = vadd.xlane.f32.xlu0 %v982
    %v984 = vpop.xlane.xlu0 %983
    %v985 = vsel %vm78, %v981, 0.0
    %986 = vadd.xlane.f32.xlu0 %v985
    %v987 = vpop.xlane.xlu0 %986
    %v988 = vmul.f32 %v984, %v868
    %v989 = vmul.f32 %v987, %v868
    %v990 = vmul.f32 %v980, %v980
    %v991 = vmul.f32 %v981, %v981
    %v992 = vsel %vm78, %v990, 0.0
    %993 = vadd.xlane.f32.xlu0 %v992
    %v994 = vpop.xlane.xlu0 %993
    %v995 = vsel %vm78, %v991, 0.0
    %996 = vadd.xlane.f32.xlu0 %v995
    %v997 = vpop.xlane.xlu0 %996
    %v998 = vmul.f32 %v994, %v868
    %v999 = vmul.f32 %v997, %v868
    %v1000 = vmul.f32 %v988, %v988
    %v1001 = vmul.f32 %v989, %v989
    %v1002 = vsub.f32 %v998, %v1000
    %v1003 = vsub.f32 %v999, %v1001
    %v1004 = vsub.f32 %v980, %v988
    %v1005 = vsub.f32 %v981, %v989
    %v1006 = vadd.f32 %v1002, 1e-05
    %v1007 = vadd.f32 %v1003, 1e-05
    %v1008 = vrsqrt.pop %v1006
    %v1009 = vmul.f32 %v1008, %v1006
    %v1010 = vmul.f32 %v1009, %v1008
    %v1011 = vmul.f32 0.5, %v1010
    %v1012 = vsub.f32 1.5, %v1011
    %v1013 = vmul.f32 %v1008, %v1012
    %vm1014 = vweird.f32 %v1006
    %vm1015 = vweird.f32 %v1008
    %vm1016 = vmor %vm1014, %vm1015
    %v1017 = vsel %vm1016, %v1008, %v1013
    %v1018 = vrsqrt.pop %v1007
    %v1019 = vmul.f32 %v1018, %v1007
    %v1020 = vmul.f32 %v1019, %v1018
    %v1021 = vmul.f32 0.5, %v1020
    %v1022 = vsub.f32 1.5, %v1021
    %v1023 = vmul.f32 %v1018, %v1022
    %vm1024 = vweird.f32 %v1007
    %vm1025 = vweird.f32 %v1018
    %vm1026 = vmor %vm1024, %vm1025
    %v1027 = vsel %vm1026, %v1018, %v1023
    %v1028 = vmul.f32 %v1004, %v1017
    %v1029 = vmul.f32 %v1005, %v1027
    %v1030 = vperm.slane %v76, 6
    %v1031 = vmul.f32 %v1028, %v1030
    %v1032 = vmul.f32 %v1029, %v1030
    %v1033 = vperm.slane %v76, 7
    %v1034 = vadd.f32 %v1031, %v1033
    %v1035 = vadd.f32 %v1032, %v1033
    %1036 = vst.msk [vmem:[#allocation7] sm:$0xff] %vm78, %v1034
    %1037 = vst.msk [vmem:[#allocation7 + $0x8] sm:$0xff] %vm78, %v1035
    // Predicated region
    $region34: #{tpu_custom_call.1} parent=1 // pred_check
      _
    $region35: #{tpu_custom_call.1} parent=1 // pred_check_branch
      %1039 = sbr.rel (0) target = $region37
    $region36: #{tpu_custom_call.1} parent=1 // pred_region
      %1041 = vsyncadd [#allocation4], 0
      %s1042 = sshll.u32 [#allocation7], 4
      %s1043 = int_to_ptr.vmem [resolvable:$true] %s1042
      %s1044 = sshll.u32 %s6, 4
      %s1045 = int_to_ptr.hbm [resolvable:$true] %s1044
      %1050 = dma.vmem_to_hbm [thread:$0]  %s1043, 256, %s1045, [#allocation4], 128, 128, 8
    $region37: #{tpu_custom_call.1} parent=1 // pred_fallthru
      _
    // Predicated region
    $region38: #{tpu_custom_call.1} parent=1 // pred_check
      _
    $region39: #{tpu_custom_call.1} parent=1 // pred_check_branch
      %1052 = sbr.rel (0) target = $region41
    $region40: #{tpu_custom_call.1} parent=1 // pred_region
      %1054 = dma.done [#allocation4], 256
    $region41: #{tpu_custom_call.1} parent=1 // pred_fallthru
      _
    %1055 = vsyncpa [#allocation3], 1
    %1056 = vsyncpa [#allocation6], 1
    %1057 = vsyncpa [#allocation4], 1

</llo_original>
